<compile_context>
chip_gen: v5e
topology: v5e:2x2
jax: 0.10.0
libtpu: 0.0.40
codegen_flags: <defaults>
</compile_context>

<pallas_src>
import functools

import jax
import jax.numpy as jnp
from jax import lax
from jax.experimental import pallas as pl
from jax.experimental.pallas import tpu as pltpu


def _round_up(n, m):
    return ((n + m - 1) // m) * m


_VMEM_LIMIT = 32 * 1024 * 1024      # v7x-safe scoped VMEM limit (64 MiB physical there)
_VMEM_HEADROOM = 4 * 1024 * 1024    # slack for compiler temporaries / spills


# ----------------------------------------------------------------------------
# Kernel
# ----------------------------------------------------------------------------
def _ae_kernel(x_ref, slab_ref, recon_ref, z_ref, *, plan, input_dim, compressed_dim):
    """One batch tile of the full 6-layer forward.

    x_ref     : [TILE_B, input_dim]   input in its natural row-major layout
    slab_ref  : [rows, cols]          packed zero-padded weights+biases (VMEM resident)
    recon_ref : [TILE_B, input_dim]   reconstruction, caller's layout
    z_ref     : [compressed_dim, TILE_B]  latent, lane-dense (wrapper transposes, tiny)
    plan      : static tuple of (w_row, b_row, out_pad, in_pad, relu) per layer
    """
    x = x_ref[...]                                        # [TILE_B, D]

    # Layer 1: produce lane-dense activations [hp, TILE_B] directly via an
    # "NT" dot (contract both minor dims) — no transpose of the lane-sparse x.
    w_row, b_row, out_p, in_p, relu = plan[0]
    w = slab_ref[w_row:w_row + out_p, 0:in_p]             # [hp, D]
    b = slab_ref[b_row:b_row + out_p, 0:1]                # [hp, 1] -> lane broadcast
    a = lax.dot_general(w, x, (((1,), (1,)), ((), ())),
                        preferred_element_type=jnp.float32) + b
    a = jnp.maximum(a, 0.0)

    z = None
    for idx in range(1, len(plan)):
        w_row, b_row, out_p, in_p, relu = plan[idx]
        w = slab_ref[w_row:w_row + out_p, 0:in_p]         # [out_p, in_p]
        b = slab_ref[b_row:b_row + out_p, 0:1]
        a = jnp.dot(w, a, preferred_element_type=jnp.float32) + b
        if relu:
            a = jnp.maximum(a, 0.0)
        if idx == 2:                                      # end of encoder -> latent z
            z = a                                         # rows >= compressed_dim are 0

    # Outputs: z stays lane-dense; recon transposed back to the caller layout
    # in-kernel (XLU slot, hidden under the writeback DMA).
    z_ref[...] = z[0:compressed_dim, :].astype(z_ref.dtype)
    recon = a[0:input_dim, :]                             # [D, TILE_B] (padded rows dropped)
    recon_ref[...] = jnp.transpose(recon).astype(recon_ref.dtype)


# ----------------------------------------------------------------------------
# Host-side parameter packing (done once)
# ----------------------------------------------------------------------------
def pack_params(params, input_dim, hidden_dim=8, compressed_dim=1, dtype=jnp.float32):
    """Pack PyTorch-layout params (W: [out, in], b: [out]) into one padded slab."""
    hidden1 = hidden_dim
    hidden2 = max(1, hidden_dim // 2)

    dp = _round_up(input_dim, 8)                                 # padded input dim
    hp = _round_up(max(hidden1, hidden2, compressed_dim), 8)     # padded hidden dim
    cols = _round_up(max(dp, hp), 128)                           # lane-aligned width

    rb = 5 * hp + dp                                             # bias row base
    rows = _round_up(2 * rb, 8)

    # (name_w, name_b, w_row, b_row, out_dim, in_dim, out_pad, in_pad, relu)
    layers = [
        ("w1", "b1", 0 * hp, rb + 0 * hp, hidden1,        input_dim,      hp, input_dim, True),
        ("w2", "b2", 1 * hp, rb + 1 * hp, hidden2,        hidden1,        hp, hp,        True),
        ("w3", "b3", 2 * hp, rb + 2 * hp, compressed_dim, hidden2,        hp, hp,        False),
        ("w4", "b4", 3 * hp, rb + 3 * hp, hidden2,        compressed_dim, hp, hp,        True),
        ("w5", "b5", 4 * hp, rb + 4 * hp, hidden1,        hidden2,        hp, hp,        True),
        ("w6", "b6", 5 * hp, rb + 5 * hp, input_dim,      hidden1,        dp, hp,        False),
    ]

    slab = jnp.zeros((rows, cols), dtype)
    plan = []
    for wn, bn, w_row, b_row, o, i, out_p, in_p, relu in layers:
        slab = slab.at[w_row:w_row + o, 0:i].set(params[wn].astype(dtype))
        slab = slab.at[b_row:b_row + o, 0].set(params[bn].astype(dtype))
        plan.append((w_row, b_row, out_p, in_p, relu))

    meta = dict(dp=dp, hp=hp, rows=rows, cols=cols, plan=tuple(plan),
                input_dim=input_dim, compressed_dim=compressed_dim)
    return slab, meta


# ----------------------------------------------------------------------------
# Tile-size selection (VMEM-budgeted, v7x-aware)
# ----------------------------------------------------------------------------
def _auto_tile_b(B, input_dim, compressed_dim, hp, rows, cols, requested=None):
    lane_cols = _round_up(max(input_dim, 1), 128)    # VMEM pads the minor dim to 128 lanes
    per_lane_bytes = 4 * (
        2 * lane_cols                                # double-buffered x tile
        + 2 * lane_cols                              # double-buffered recon tile
        + 2 * _round_up(compressed_dim, 8)           # double-buffered z tile
        + 4 * hp                                     # ~4 live lane-dense activations
        + 2 * lane_cols                              # batch-major temporaries (x value, recon^T)
    )
    fixed_bytes = 2 * rows * cols * 4                # (conservatively) double-buffered slab
    budget = _VMEM_LIMIT - _VMEM_HEADROOM - fixed_bytes
    max_tile = max(128, (budget // per_lane_bytes) // 128 * 128)

    tile = 8192 if requested is None else _round_up(max(requested, 1), 128)
    tile = min(tile, max_tile)
    tile = min(tile, _round_up(max(B, 1), 128))      # don't pad tiny batches up to the tile
    if B > 128:
        # v7x has 2 TensorCores: keep at least 2 "parallel" grid tiles so both get work.
        tile = min(tile, max(128, _round_up(pl.cdiv(B, 2), 128)))
    return max(128, (tile // 128) * 128)


# ----------------------------------------------------------------------------
# Forward wrapper
# ----------------------------------------------------------------------------
def simple_ae_forward(x, slab, meta, *, tile_b=None):
    """x: [B, input_dim] f32 -> (z: [B, compressed_dim], recon: [B, input_dim])."""
    B, input_dim = x.shape
    assert input_dim == meta["input_dim"]
    cd = meta["compressed_dim"]
    hp, rows, cols = meta["hp"], meta["rows"], meta["cols"]

    tile_b = _auto_tile_b(B, input_dim, cd, hp, rows, cols, tile_b)
    b_pad = _round_up(B, tile_b)
    n_tiles = b_pad // tile_b

    # Only pad the batch when B is not a multiple of the tile; when it is, the
    # kernel reads/writes the caller's arrays directly (no wrapper HBM traffic).
    x_in = x if b_pad == B else jnp.zeros((b_pad, input_dim), x.dtype).at[:B].set(x)

    kernel = functools.partial(_ae_kernel, plan=meta["plan"],
                               input_dim=input_dim, compressed_dim=cd)

    recon_full, z_full = pl.pallas_call(
        kernel,
        out_shape=(
            jax.ShapeDtypeStruct((b_pad, input_dim), x.dtype),   # recon, caller layout
            jax.ShapeDtypeStruct((cd, b_pad), x.dtype),          # z, lane-dense
        ),
        grid_spec=pltpu.PrefetchScalarGridSpec(
            num_scalar_prefetch=0,
            grid=(n_tiles,),
            in_specs=[
                pl.BlockSpec((tile_b, input_dim), lambda i: (i, 0)),  # x tile (pipelined)
                pl.BlockSpec((rows, cols), lambda i: (0, 0)),         # param slab (resident)
            ],
            out_specs=[
                pl.BlockSpec((tile_b, input_dim), lambda i: (i, 0)),  # recon tile
                pl.BlockSpec((cd, tile_b), lambda i: (0, i)),         # z tile
            ],
        ),
        compiler_params=pltpu.CompilerParams(
            dimension_semantics=("parallel",),   # v7x: shard batch tiles over 2 TCs
            vmem_limit_bytes=_VMEM_LIMIT,
        ),
    )(x_in, slab)

    recon = recon_full if b_pad == B else recon_full[:B]
    z = z_full.T if b_pad == B else z_full[:, :B].T      # [B, compressed_dim], tiny copy
    return z, recon


# ----------------------------------------------------------------------------
# Init + pure-JAX reference (PyTorch nn.Linear layout: W [out, in], b [out])
# ----------------------------------------------------------------------------
def init_params(key, input_dim, hidden_dim=8, compressed_dim=1, dtype=jnp.float32):
    hidden1 = hidden_dim
    hidden2 = max(1, hidden_dim // 2)
    dims = [
        ("w1", "b1", input_dim, hidden1),
        ("w2", "b2", hidden1, hidden2),
        ("w3", "b3", hidden2, compressed_dim),
        ("w4", "b4", compressed_dim, hidden2),
        ("w5", "b5", hidden2, hidden1),
        ("w6", "b6", hidden1, input_dim),
    ]
    params = {}
    keys = jax.random.split(key, 2 * len(dims))
    for i, (wn, bn, fan_in, fan_out) in enumerate(dims):
        bound = 1.0 / jnp.sqrt(jnp.asarray(fan_in, dtype))
        params[wn] = jax.random.uniform(
            keys[2 * i], (fan_out, fan_in), dtype, minval=-bound, maxval=bound)
        params[bn] = jax.random.uniform(
            keys[2 * i + 1], (fan_out,), dtype, minval=-bound, maxval=bound)
    return params


def _reference_forward(x, p):
    hi = jax.lax.Precision.HIGHEST
    lin = lambda a, w, b: jnp.dot(a, w.T, precision=hi) + b
    h = jnp.maximum(lin(x, p["w1"], p["b1"]), 0.0)
    h = jnp.maximum(lin(h, p["w2"], p["b2"]), 0.0)
    z = lin(h, p["w3"], p["b3"])
    d = jnp.maximum(lin(z, p["w4"], p["b4"]), 0.0)
    d = jnp.maximum(lin(d, p["w5"], p["b5"]), 0.0)
    recon = lin(d, p["w6"], p["b6"])
    return z, recon


if __name__ == "__main__":
    key = jax.random.PRNGKey(0)
    k_x, k_p = jax.random.split(key)

    B, INPUT_DIM, HIDDEN_DIM, COMPRESSED_DIM = 8, 16, 8, 1

    x = jax.random.normal(k_x, (B, INPUT_DIM), dtype=jnp.float32)
    params = init_params(k_p, INPUT_DIM, HIDDEN_DIM, COMPRESSED_DIM)
    slab, meta = pack_params(params, INPUT_DIM, HIDDEN_DIM, COMPRESSED_DIM)

    z, recon = simple_ae_forward(x, slab, meta)
    jax.block_until_ready((z, recon))

    # sanity check against pure-JAX reference
    z_ref, recon_ref = _reference_forward(x, params)
    assert z.shape == (B, COMPRESSED_DIM) and recon.shape == (B, INPUT_DIM)
    assert jnp.allclose(z, z_ref, atol=1e-4, rtol=1e-4)
    assert jnp.allclose(recon, recon_ref, atol=1e-4, rtol=1e-4)

    print("KERNEL_OK")
</pallas_src>

<mosaic_0001>
module attributes {stable_mosaic.version = 11 : i64} {
  func.func @_ae_kernel(%arg0: i32, %arg1: memref<128x16xf32, #tpu.memory_space<vmem>>, %arg2: memref<112x128xf32, #tpu.memory_space<vmem>>, %arg3: memref<128x16xf32, #tpu.memory_space<vmem>>, %arg4: memref<1x128xf32, #tpu.memory_space<vmem>>) attributes {dimension_semantics = [#tpu.dimension_semantics<parallel>], iteration_bounds = array<i64: 1>, scalar_prefetch = 0 : i64, scratch_operands = 0 : i64, tpu.core_type = #tpu.core_type<tc>, window_params = [{transform_indices = @transform_0, window_bounds = array<i64: 128, 16>}, {pipeline_mode = #tpu.pipeline_mode<synchronous>, transform_indices = @transform_1, window_bounds = array<i64: 112, 128>}, {transform_indices = @transform_2, window_bounds = array<i64: 128, 16>}, {transform_indices = @transform_3, window_bounds = array<i64: 1, 128>}]} {
    %c0 = arith.constant 0 : index
    %c0_0 = arith.constant 0 : index
    %0 = vector.load %arg1[%c0, %c0_0] : memref<128x16xf32, #tpu.memory_space<vmem>>, vector<128x16xf32>
    %c0_1 = arith.constant 0 : index
    %c0_2 = arith.constant 0 : index
    %1 = vector.load %arg2[%c0_1, %c0_2] : memref<112x128xf32, #tpu.memory_space<vmem>>, vector<8x16xf32>
    %c56 = arith.constant 56 : index
    %c0_3 = arith.constant 0 : index
    %2 = vector.load %arg2[%c56, %c0_3] : memref<112x128xf32, #tpu.memory_space<vmem>>, vector<8x1xf32>
    %cst = arith.constant dense<0.000000e+00> : vector<8x128xf32>
    %3 = tpu.matmul %1, %0, %cst {dimension_numbers = #tpu.dot_dimension_numbers<[1], [1], [0], [0], [0, 0, 1, 0], [], []>} : vector<8x16xf32>, vector<128x16xf32>, vector<8x128xf32> -> vector<8x128xf32>
    %4 = vector.broadcast %2 : vector<8x1xf32> to vector<8x128xf32>
    %5 = arith.addf %3, %4 : vector<8x128xf32>
    %cst_4 = arith.constant 0.000000e+00 : f32
    %6 = vector.broadcast %cst_4 : f32 to vector<8x128xf32>
    %7 = arith.maximumf %5, %6 : vector<8x128xf32>
    %c8 = arith.constant 8 : index
    %c0_5 = arith.constant 0 : index
    %8 = vector.load %arg2[%c8, %c0_5] : memref<112x128xf32, #tpu.memory_space<vmem>>, vector<8x8xf32>
    %c64 = arith.constant 64 : index
    %c0_6 = arith.constant 0 : index
    %9 = vector.load %arg2[%c64, %c0_6] : memref<112x128xf32, #tpu.memory_space<vmem>>, vector<8x1xf32>
    %cst_7 = arith.constant dense<0.000000e+00> : vector<8x128xf32>
    %10 = tpu.matmul %8, %7, %cst_7 {dimension_numbers = #tpu.dot_dimension_numbers<[1], [0], [0], [1], [0, 0, 1, 1], [], []>} : vector<8x8xf32>, vector<8x128xf32>, vector<8x128xf32> -> vector<8x128xf32>
    %11 = vector.broadcast %9 : vector<8x1xf32> to vector<8x128xf32>
    %12 = arith.addf %10, %11 : vector<8x128xf32>
    %cst_8 = arith.constant 0.000000e+00 : f32
    %13 = vector.broadcast %cst_8 : f32 to vector<8x128xf32>
    %14 = arith.maximumf %12, %13 : vector<8x128xf32>
    %c16 = arith.constant 16 : index
    %c0_9 = arith.constant 0 : index
    %15 = vector.load %arg2[%c16, %c0_9] : memref<112x128xf32, #tpu.memory_space<vmem>>, vector<8x8xf32>
    %c72 = arith.constant 72 : index
    %c0_10 = arith.constant 0 : index
    %16 = vector.load %arg2[%c72, %c0_10] : memref<112x128xf32, #tpu.memory_space<vmem>>, vector<8x1xf32>
    %cst_11 = arith.constant dense<0.000000e+00> : vector<8x128xf32>
    %17 = tpu.matmul %15, %14, %cst_11 {dimension_numbers = #tpu.dot_dimension_numbers<[1], [0], [0], [1], [0, 0, 1, 1], [], []>} : vector<8x8xf32>, vector<8x128xf32>, vector<8x128xf32> -> vector<8x128xf32>
    %18 = vector.broadcast %16 : vector<8x1xf32> to vector<8x128xf32>
    %19 = arith.addf %17, %18 : vector<8x128xf32>
    %c24 = arith.constant 24 : index
    %c0_12 = arith.constant 0 : index
    %20 = vector.load %arg2[%c24, %c0_12] : memref<112x128xf32, #tpu.memory_space<vmem>>, vector<8x8xf32>
    %c80 = arith.constant 80 : index
    %c0_13 = arith.constant 0 : index
    %21 = vector.load %arg2[%c80, %c0_13] : memref<112x128xf32, #tpu.memory_space<vmem>>, vector<8x1xf32>
    %cst_14 = arith.constant dense<0.000000e+00> : vector<8x128xf32>
    %22 = tpu.matmul %20, %19, %cst_14 {dimension_numbers = #tpu.dot_dimension_numbers<[1], [0], [0], [1], [0, 0, 1, 1], [], []>} : vector<8x8xf32>, vector<8x128xf32>, vector<8x128xf32> -> vector<8x128xf32>
    %23 = vector.broadcast %21 : vector<8x1xf32> to vector<8x128xf32>
    %24 = arith.addf %22, %23 : vector<8x128xf32>
    %cst_15 = arith.constant 0.000000e+00 : f32
    %25 = vector.broadcast %cst_15 : f32 to vector<8x128xf32>
    %26 = arith.maximumf %24, %25 : vector<8x128xf32>
    %c32 = arith.constant 32 : index
    %c0_16 = arith.constant 0 : index
    %27 = vector.load %arg2[%c32, %c0_16] : memref<112x128xf32, #tpu.memory_space<vmem>>, vector<8x8xf32>
    %c88 = arith.constant 88 : index
    %c0_17 = arith.constant 0 : index
    %28 = vector.load %arg2[%c88, %c0_17] : memref<112x128xf32, #tpu.memory_space<vmem>>, vector<8x1xf32>
    %cst_18 = arith.constant dense<0.000000e+00> : vector<8x128xf32>
    %29 = tpu.matmul %27, %26, %cst_18 {dimension_numbers = #tpu.dot_dimension_numbers<[1], [0], [0], [1], [0, 0, 1, 1], [], []>} : vector<8x8xf32>, vector<8x128xf32>, vector<8x128xf32> -> vector<8x128xf32>
    %30 = vector.broadcast %28 : vector<8x1xf32> to vector<8x128xf32>
    %31 = arith.addf %29, %30 : vector<8x128xf32>
    %cst_19 = arith.constant 0.000000e+00 : f32
    %32 = vector.broadcast %cst_19 : f32 to vector<8x128xf32>
    %33 = arith.maximumf %31, %32 : vector<8x128xf32>
    %c40 = arith.constant 40 : index
    %c0_20 = arith.constant 0 : index
    %34 = vector.load %arg2[%c40, %c0_20] : memref<112x128xf32, #tpu.memory_space<vmem>>, vector<16x8xf32>
    %c96 = arith.constant 96 : index
    %c0_21 = arith.constant 0 : index
    %35 = vector.load %arg2[%c96, %c0_21] : memref<112x128xf32, #tpu.memory_space<vmem>>, vector<16x1xf32>
    %cst_22 = arith.constant dense<0.000000e+00> : vector<16x128xf32>
    %36 = tpu.matmul %34, %33, %cst_22 {dimension_numbers = #tpu.dot_dimension_numbers<[1], [0], [0], [1], [0, 0, 1, 1], [], []>} : vector<16x8xf32>, vector<8x128xf32>, vector<16x128xf32> -> vector<16x128xf32>
    %37 = vector.broadcast %35 : vector<16x1xf32> to vector<16x128xf32>
    %38 = arith.addf %36, %37 : vector<16x128xf32>
    %39 = vector.extract_strided_slice %19 {offsets = [0, 0], sizes = [1, 128], strides = [1, 1]} : vector<8x128xf32> to vector<1x128xf32>
    %c0_23 = arith.constant 0 : index
    %c0_24 = arith.constant 0 : index
    %40 = vector.load %arg4[%c0_23, %c0_24] : memref<1x128xf32, #tpu.memory_space<vmem>>, vector<1x128xf32>
    tpu.vector_store %arg4[%c0_23, %c0_24], %39 {strides = array<i32>} : memref<1x128xf32, #tpu.memory_space<vmem>>, vector<1x128xf32>,
    %41 = tpu.transpose %38, [1, 0] : vector<16x128xf32> -> vector<128x16xf32>
    %c0_25 = arith.constant 0 : index
    %c0_26 = arith.constant 0 : index
    %42 = vector.load %arg3[%c0_25, %c0_26] : memref<128x16xf32, #tpu.memory_space<vmem>>, vector<128x16xf32>
    tpu.vector_store %arg3[%c0_25, %c0_26], %41 {strides = array<i32>} : memref<128x16xf32, #tpu.memory_space<vmem>>, vector<128x16xf32>,
    return
  }
  func.func @transform_0(%arg0: i32) -> (i32, i32) {
    %c0_i32 = arith.constant 0 : i32
    %c0_i32_0 = arith.constant 0 : i32
    return %arg0, %c0_i32 : i32, i32
  }
  func.func @transform_1(%arg0: i32) -> (i32, i32) {
    %c0_i32 = arith.constant 0 : i32
    %c0_i32_0 = arith.constant 0 : i32
    %c0_i32_1 = arith.constant 0 : i32
    return %c0_i32, %c0_i32_0 : i32, i32
  }
  func.func @transform_2(%arg0: i32) -> (i32, i32) {
    %c0_i32 = arith.constant 0 : i32
    %c0_i32_0 = arith.constant 0 : i32
    return %arg0, %c0_i32 : i32, i32
  }
  func.func @transform_3(%arg0: i32) -> (i32, i32) {
    %c0_i32 = arith.constant 0 : i32
    %c0_i32_0 = arith.constant 0 : i32
    return %c0_i32, %arg0 : i32, i32
  }
}

</mosaic_0001>

<llo_original>
// kernel: tpu_custom_call.1
$region0: #{tpu_custom_call.1}
  #allocation0 [shape = 'u32[]', space=smem, size = 0x4, offset = 0x4, fixed_abs, tag = 'smem constant byte address 0x4 - core index']
  #allocation1 [shape = 'u32[72,128]{1,0:T(1,128)}', space=vmem, size = 0x9000, scoped, tag = 'internal scratch']
  %s0 = inlined_call_operand.vmem [shape: f32[128,16], index: 0, kind: input, shape index: {}]
  %s1 = inlined_call_operand.vmem [shape: f32[112,128], index: 1, kind: input, shape index: {}]
  %s2 = inlined_call_operand.vmem [shape: f32[128,16], index: 2, kind: output, shape index: {0}]
  %s3 = inlined_call_operand.hbm [shape: f32[1,128], index: 3, kind: output, shape index: {1}]
  %4 = xla_tuple %s2, %s3
  %s5 = sld [smem:[#allocation0]]
  $region26: #{tpu_custom_call.1} parent=0
    _
  %s7 = ssub.s32 1, %s5
  %s8 = scalar_select 0, %s7, %s5
  $region1: #{tpu_custom_call.1} parent=0
    #allocation2 [shape = 'u8[512]{0}', space=vmem, size = 0x400, scoped, tag = 'output window, operand 1, single buffered']
    #allocation3 [shape = 's32[1]{0}', space=sflag, size = 0x4, scoped, tag = 'scoped memory for tpu_custom_call.1']
    %9 = vsyncpa [#allocation3], 0
    // Predicated region
    $region2: #{tpu_custom_call.1} parent=1 // pred_check
      _
    $region3: #{tpu_custom_call.1} parent=1 // pred_check_branch
      %11 = sbr.rel (0) target = $region5
    $region4: #{tpu_custom_call.1} parent=1 // pred_region
      _
    $region5: #{tpu_custom_call.1} parent=1 // pred_fallthru
      _
    // Predicated region
    $region6: #{tpu_custom_call.1} parent=1 // pred_check
      _
    $region7: #{tpu_custom_call.1} parent=1 // pred_check_branch
      %13 = sbr.rel (0) target = $region9
    $region8: #{tpu_custom_call.1} parent=1 // pred_region
      _
    $region9: #{tpu_custom_call.1} parent=1 // pred_fallthru
      _
    %v14 = vld [vmem:[%s0] sm:$0xff]
    %v15 = vld [vmem:[%s0 + $0x8] sm:$0xff]
    %v16 = vld [vmem:[%s0 + $0x10] sm:$0xff]
    %v17 = vld [vmem:[%s0 + $0x18] sm:$0xff]
    %v18 = vld [vmem:[%s0 + $0x20] sm:$0xff]
    %v19 = vld [vmem:[%s0 + $0x28] sm:$0xff]
    %v20 = vld [vmem:[%s0 + $0x30] sm:$0xff]
    %v21 = vld [vmem:[%s0 + $0x38] sm:$0xff]
    %v22 = vld [vmem:[%s0 + $0x40] sm:$0xff]
    %v23 = vld [vmem:[%s0 + $0x48] sm:$0xff]
    %v24 = vld [vmem:[%s0 + $0x50] sm:$0xff]
    %v25 = vld [vmem:[%s0 + $0x58] sm:$0xff]
    %v26 = vld [vmem:[%s0 + $0x60] sm:$0xff]
    %v27 = vld [vmem:[%s0 + $0x68] sm:$0xff]
    %v28 = vld [vmem:[%s0 + $0x70] sm:$0xff]
    %v29 = vld [vmem:[%s0 + $0x78] sm:$0xff]
    %v30 = vld [vmem:[%s1] sm:$0xff]
    %v31 = vld [vmem:[%s1 + $0x38] sm:$0xff]
    %33 = vset.pattern.permute.xlu0 0
    %34 = vperm.xlu0 %33, %v31
    %v35 = vpop.permute.xlu0 %34
    %vm37 = vcmask 130048
    %v39 = vsel %vm37, %v30, 0
    %v42 = vsel %vm37, %v14, 0
    %v45 = vsel %vm37, %v15, 0
    %v48 = vsel %vm37, %v16, 0
    %v51 = vsel %vm37, %v17, 0
    %v54 = vsel %vm37, %v18, 0
    %v57 = vsel %vm37, %v19, 0
    %v60 = vsel %vm37, %v20, 0
    %v63 = vsel %vm37, %v21, 0
    %v66 = vsel %vm37, %v22, 0
    %v69 = vsel %vm37, %v23, 0
    %v72 = vsel %vm37, %v24, 0
    %v75 = vsel %vm37, %v25, 0
    %v78 = vsel %vm37, %v26, 0
    %v81 = vsel %vm37, %v27, 0
    %v84 = vsel %vm37, %v28, 0
    %v87 = vsel %vm37, %v29, 0
    %89 = vmatpush.xpose.msra.mxu0 %v87
    %90 = vmatpush.xpose.msra.mxu0 %v84
    %91 = vmatpush.xpose.msra.mxu0 %v81
    %92 = vmatpush.xpose.msra.mxu0 %v78
    %93 = vmatpush.xpose.msra.mxu0 %v75
    %94 = vmatpush.xpose.msra.mxu0 %v72
    %95 = vmatpush.xpose.msra.mxu0 %v69
    %96 = vmatpush.xpose.msra.mxu0 %v66
    %97 = vmatpush.xpose.msra.mxu0 %v63
    %98 = vmatpush.xpose.msra.mxu0 %v60
    %99 = vmatpush.xpose.msra.mxu0 %v57
    %100 = vmatpush.xpose.msra.mxu0 %v54
    %101 = vmatpush.xpose.msra.mxu0 %v51
    %102 = vmatpush.xpose.msra.mxu0 %v48
    %103 = vmatpush.xpose.msra.mxu0 %v45
    %104 = vmatpush.xpose.msra.mxu0 %v42
    %105 = vmatmul.f32.gmra.mxu0 %v39
    %v106 = vpop.f32.mrf.mxu0
    %v107 = vadd.f32 %v35, %v106
    %108 = vdwg.mxu0
    %v109 = vmax.f32 %v107, 0.0
    %v110 = vld [vmem:[%s1 + $0x8] sm:$0xff]
    %v111 = vld [vmem:[%s1 + $0x40] sm:$0xff]
    %113 = vset.pattern.permute.xlu0 0
    %114 = vperm.xlu0 %113, %v111
    %v115 = vpop.permute.xlu0 %114
    %vm117 = vcmask 64512
    %v119 = vsel %vm117, %v110, 0
    %121 = vmatpush.msra.mxu0 0.0
    %122 = vmatpush.msra.mxu0 0.0
    %123 = vmatpush.msra.mxu0 0.0
    %124 = vmatpush.msra.mxu0 0.0
    %125 = vmatpush.msra.mxu0 0.0
    %126 = vmatpush.msra.mxu0 0.0
    %127 = vmatpush.msra.mxu0 0.0
    %128 = vmatpush.msra.mxu0 0.0
    %129 = vmatpush.msra.mxu0 0.0
    %130 = vmatpush.msra.mxu0 0.0
    %131 = vmatpush.msra.mxu0 0.0
    %132 = vmatpush.msra.mxu0 0.0
    %133 = vmatpush.msra.mxu0 0.0
    %134 = vmatpush.msra.mxu0 0.0
    %135 = vmatpush.msra.mxu0 0.0
    %136 = vmatpush.msra.mxu0 %v109
    %137 = vmatmul.f32.gmra.mxu0 %v119
    %v138 = vpop.f32.mrf.mxu0
    %v139 = vadd.f32 %v115, %v138
    %140 = vdwg.mxu0
    %v141 = vmax.f32 %v139, 0.0
    %v142 = vld [vmem:[%s1 + $0x10] sm:$0xff]
    %v143 = vld [vmem:[%s1 + $0x48] sm:$0xff]
    %145 = vset.pattern.permute.xlu0 0
    %146 = vperm.xlu0 %145, %v143
    %v147 = vpop.permute.xlu0 %146
    %v150 = vsel %vm117, %v142, 0
    %152 = vmatpush.msra.mxu0 0.0
    %153 = vmatpush.msra.mxu0 0.0
    %154 = vmatpush.msra.mxu0 0.0
    %155 = vmatpush.msra.mxu0 0.0
    %156 = vmatpush.msra.mxu0 0.0
    %157 = vmatpush.msra.mxu0 0.0
    %158 = vmatpush.msra.mxu0 0.0
    %159 = vmatpush.msra.mxu0 0.0
    %160 = vmatpush.msra.mxu0 0.0
    %161 = vmatpush.msra.mxu0 0.0
    %162 = vmatpush.msra.mxu0 0.0
    %163 = vmatpush.msra.mxu0 0.0
    %164 = vmatpush.msra.mxu0 0.0
    %165 = vmatpush.msra.mxu0 0.0
    %166 = vmatpush.msra.mxu0 0.0
    %167 = vmatpush.msra.mxu0 %v141
    %168 = vmatmul.f32.gmra.mxu0 %v150
    %v169 = vpop.f32.mrf.mxu0
    %v170 = vadd.f32 %v147, %v169
    %171 = vdwg.mxu0
    %v172 = vld [vmem:[%s1 + $0x18] sm:$0xff]
    %v173 = vld [vmem:[%s1 + $0x50] sm:$0xff]
    %175 = vset.pattern.permute.xlu0 0
    %176 = vperm.xlu0 %175, %v173
    %v177 = vpop.permute.xlu0 %176
    %v180 = vsel %vm117, %v172, 0
    %182 = vmatpush.msra.mxu0 0.0
    %183 = vmatpush.msra.mxu0 0.0
    %184 = vmatpush.msra.mxu0 0.0
    %185 = vmatpush.msra.mxu0 0.0
    %186 = vmatpush.msra.mxu0 0.0
    %187 = vmatpush.msra.mxu0 0.0
    %188 = vmatpush.msra.mxu0 0.0
    %189 = vmatpush.msra.mxu0 0.0
    %190 = vmatpush.msra.mxu0 0.0
    %191 = vmatpush.msra.mxu0 0.0
    %192 = vmatpush.msra.mxu0 0.0
    %193 = vmatpush.msra.mxu0 0.0
    %194 = vmatpush.msra.mxu0 0.0
    %195 = vmatpush.msra.mxu0 0.0
    %196 = vmatpush.msra.mxu0 0.0
    %197 = vmatpush.msra.mxu0 %v170
    %198 = vmatmul.f32.gmra.mxu0 %v180
    %v199 = vpop.f32.mrf.mxu0
    %v200 = vadd.f32 %v177, %v199
    %201 = vdwg.mxu0
    %v202 = vmax.f32 %v200, 0.0
    %v203 = vld [vmem:[%s1 + $0x20] sm:$0xff]
    %v204 = vld [vmem:[%s1 + $0x58] sm:$0xff]
    %206 = vset.pattern.permute.xlu0 0
    %207 = vperm.xlu0 %206, %v204
    %v208 = vpop.permute.xlu0 %207
    %v211 = vsel %vm117, %v203, 0
    %213 = vmatpush.msra.mxu0 0.0
    %214 = vmatpush.msra.mxu0 0.0
    %215 = vmatpush.msra.mxu0 0.0
    %216 = vmatpush.msra.mxu0 0.0
    %217 = vmatpush.msra.mxu0 0.0
    %218 = vmatpush.msra.mxu0 0.0
    %219 = vmatpush.msra.mxu0 0.0
    %220 = vmatpush.msra.mxu0 0.0
    %221 = vmatpush.msra.mxu0 0.0
    %222 = vmatpush.msra.mxu0 0.0
    %223 = vmatpush.msra.mxu0 0.0
    %224 = vmatpush.msra.mxu0 0.0
    %225 = vmatpush.msra.mxu0 0.0
    %226 = vmatpush.msra.mxu0 0.0
    %227 = vmatpush.msra.mxu0 0.0
    %228 = vmatpush.msra.mxu0 %v202
    %229 = vmatmul.f32.gmra.mxu0 %v211
    %v230 = vpop.f32.mrf.mxu0
    %v231 = vadd.f32 %v208, %v230
    %232 = vdwg.mxu0
    %v233 = vmax.f32 %v231, 0.0
    %v234 = vld [vmem:[%s1 + $0x28] sm:$0xff]
    %v235 = vld [vmem:[%s1 + $0x30] sm:$0xff]
    %v236 = vld [vmem:[%s1 + $0x60] sm:$0xff]
    %v237 = vld [vmem:[%s1 + $0x68] sm:$0xff]
    %239 = vset.pattern.permute.xlu0 0
    %240 = vperm.xlu0 %239, %v236
    %v241 = vpop.permute.xlu0 %240
    %244 = vset.pattern.permute.xlu0 0
    %245 = vperm.xlu0 %244, %v237
    %v246 = vpop.permute.xlu0 %245
    %v249 = vsel %vm117, %v234, 0
    %v252 = vsel %vm117, %v235, 0
    %254 = vmatpush.msra.mxu0 0.0
    %255 = vmatpush.msra.mxu0 0.0
    %256 = vmatpush.msra.mxu0 0.0
    %257 = vmatpush.msra.mxu0 0.0
    %258 = vmatpush.msra.mxu0 0.0
    %259 = vmatpush.msra.mxu0 0.0
    %260 = vmatpush.msra.mxu0 0.0
    %261 = vmatpush.msra.mxu0 0.0
    %262 = vmatpush.msra.mxu0 0.0
    %263 = vmatpush.msra.mxu0 0.0
    %264 = vmatpush.msra.mxu0 0.0
    %265 = vmatpush.msra.mxu0 0.0
    %266 = vmatpush.msra.mxu0 0.0
    %267 = vmatpush.msra.mxu0 0.0
    %268 = vmatpush.msra.mxu0 0.0
    %269 = vmatpush.msra.mxu0 %v233
    %270 = vmatmul.f32.gmra.mxu0 %v249
    %v271 = vpop.f32.mrf.mxu0
    %v272 = vadd.f32 %v241, %v271
    %273 = vmatmul.f32.gmra.mxu0 %v252
    %v274 = vpop.f32.mrf.mxu0
    %v275 = vadd.f32 %v246, %v274
    %276 = vdwg.mxu0
    %277 = vst [vmem:[#allocation2] sm:$0x1] %v170
    %278 = vxpose.xlu0.b32.start [1/16] %v272, 128
    %279 = vxpose.xlu0.b32.cont [2/16] %v275, 128
    %280 = vxpose.xlu0.b32.cont [3/16] 0.0, 128
    %281 = vxpose.xlu0.b32.cont [4/16] 0.0, 128
    %282 = vxpose.xlu0.b32.cont [5/16] 0.0, 128
    %283 = vxpose.xlu0.b32.cont [6/16] 0.0, 128
    %284 = vxpose.xlu0.b32.cont [7/16] 0.0, 128
    %285 = vxpose.xlu0.b32.cont [8/16] 0.0, 128
    %286 = vxpose.xlu0.b32.cont [9/16] 0.0, 128
    %287 = vxpose.xlu0.b32.cont [10/16] 0.0, 128
    %288 = vxpose.xlu0.b32.cont [11/16] 0.0, 128
    %289 = vxpose.xlu0.b32.cont [12/16] 0.0, 128
    %290 = vxpose.xlu0.b32.cont [13/16] 0.0, 128
    %291 = vxpose.xlu0.b32.cont [14/16] 0.0, 128
    %292 = vxpose.xlu0.b32.cont [15/16] 0.0, 128
    %293 = vxpose.xlu0.b32.end [16/16] 0.0, 128
    %v294 = vpop.trf.xlu0
    %v295 = vpop.trf.xlu0
    %v296 = vpop.trf.xlu0
    %v297 = vpop.trf.xlu0
    %v298 = vpop.trf.xlu0
    %v299 = vpop.trf.xlu0
    %v300 = vpop.trf.xlu0
    %v301 = vpop.trf.xlu0
    %v302 = vpop.trf.xlu0
    %v303 = vpop.trf.xlu0
    %v304 = vpop.trf.xlu0
    %v305 = vpop.trf.xlu0
    %v306 = vpop.trf.xlu0
    %v307 = vpop.trf.xlu0
    %v308 = vpop.trf.xlu0
    %v309 = vpop.trf.xlu0
    %310 = vst.msk [vmem:[%s2] sm:$0xff] %vm37, %v294
    %311 = vst.msk [vmem:[%s2 + $0x8] sm:$0xff] %vm37, %v295
    %312 = vst.msk [vmem:[%s2 + $0x10] sm:$0xff] %vm37, %v296
    %313 = vst.msk [vmem:[%s2 + $0x18] sm:$0xff] %vm37, %v297
    %314 = vst.msk [vmem:[%s2 + $0x20] sm:$0xff] %vm37, %v298
    %315 = vst.msk [vmem:[%s2 + $0x28] sm:$0xff] %vm37, %v299
    %316 = vst.msk [vmem:[%s2 + $0x30] sm:$0xff] %vm37, %v300
    %317 = vst.msk [vmem:[%s2 + $0x38] sm:$0xff] %vm37, %v301
    %318 = vst.msk [vmem:[%s2 + $0x40] sm:$0xff] %vm37, %v302
    %319 = vst.msk [vmem:[%s2 + $0x48] sm:$0xff] %vm37, %v303
    %320 = vst.msk [vmem:[%s2 + $0x50] sm:$0xff] %vm37, %v304
    %321 = vst.msk [vmem:[%s2 + $0x58] sm:$0xff] %vm37, %v305
    %322 = vst.msk [vmem:[%s2 + $0x60] sm:$0xff] %vm37, %v306
    %323 = vst.msk [vmem:[%s2 + $0x68] sm:$0xff] %vm37, %v307
    %324 = vst.msk [vmem:[%s2 + $0x70] sm:$0xff] %vm37, %v308
    %325 = vst.msk [vmem:[%s2 + $0x78] sm:$0xff] %vm37, %v309
    // Predicated region
    $region10: #{tpu_custom_call.1} parent=1 // pred_check
      _
    $region11: #{tpu_custom_call.1} parent=1 // pred_check_branch
      %327 = sbr.rel (0) target = $region13
    $region12: #{tpu_custom_call.1} parent=1 // pred_region
      _
    $region13: #{tpu_custom_call.1} parent=1 // pred_fallthru
      _
    // Predicated region
    $region14: #{tpu_custom_call.1} parent=1 // pred_check
      _
    $region15: #{tpu_custom_call.1} parent=1 // pred_check_branch
      %329 = sbr.rel (0) target = $region17
    $region16: #{tpu_custom_call.1} parent=1 // pred_region
      %331 = vsyncadd [#allocation3], 0
      %s333 = sshll.u32 [#allocation2], 4
      %s334 = int_to_ptr.vmem [resolvable:$true] %s333
      %s335 = sshll.u32 %s3, 4
      %s336 = int_to_ptr.hbm [resolvable:$true] %s335
      %338 = dma.vmem_to_hbm [thread:$0]  %s334, 16, %s336, [#allocation3]
    $region17: #{tpu_custom_call.1} parent=1 // pred_fallthru
      _
    // Predicated region
    $region18: #{tpu_custom_call.1} parent=1 // pred_check
      _
    $region19: #{tpu_custom_call.1} parent=1 // pred_check_branch
      %340 = sbr.rel (0) target = $region21
    $region20: #{tpu_custom_call.1} parent=1 // pred_region
      _
    $region21: #{tpu_custom_call.1} parent=1 // pred_fallthru
      _
    // Predicated region
    $region22: #{tpu_custom_call.1} parent=1 // pred_check
      _
    $region23: #{tpu_custom_call.1} parent=1 // pred_check_branch
      %342 = sbr.rel (0) target = $region25
    $region24: #{tpu_custom_call.1} parent=1 // pred_region
      %344 = dma.done [#allocation3], 16
    $region25: #{tpu_custom_call.1} parent=1 // pred_fallthru
      _
    %345 = vsyncpa [#allocation3], 1

</llo_original>
